<compile_context>
chip_gen: v5e
topology: v5e:2x2
jax: 0.10.0
libtpu: 0.0.40
codegen_flags: <defaults>
</compile_context>

<pallas_src>
import jax
import jax.numpy as jnp
from jax.experimental import pallas as pl
from jax.experimental.pallas import tpu as pltpu

IN_DIM = 168
OUT_DIM = 9
HIDDEN = (256, 128, 64, 32)
LANE = 128


def _round_up(x, m):
    return ((x + m - 1) // m) * m


def mlp_kernel(x_ref,
               w1_ref, b1_ref,
               w2_ref, b2_ref,
               w3_ref, b3_ref,
               w4_ref, b4_ref,
               w5_ref, b5_ref,
               o_ref):
    """Fused 5-layer MLP forward for one (tb, in_dim) batch tile.

    f32 input is cast to bf16 in-kernel (VPU, hidden under DMA); bf16 MXU
    operands with f32 accumulation; bias-add / ReLU in f32; hidden activations
    re-quantized to bf16 between layers; lane-dense (tb, 128) bf16 output.
    """

    def dense(h_bf16, w_ref, b_ref, relu):
        y = jnp.dot(h_bf16, w_ref[...],
                    preferred_element_type=jnp.float32) + b_ref[...]
        if relu:
            return jnp.maximum(y, 0.0).astype(jnp.bfloat16)
        return y

    h = x_ref[...].astype(jnp.bfloat16)          # in-kernel cast, no extra HBM pass
    h = dense(h, w1_ref, b1_ref, relu=True)      # fc1 + relu
    h = dense(h, w2_ref, b2_ref, relu=True)      # fc2 + relu
    h = dense(h, w3_ref, b3_ref, relu=True)      # fc3 + relu (padded to 128)
    h = dense(h, w4_ref, b4_ref, relu=True)      # fc4 + relu (padded to 128)
    y = dense(h, w5_ref, b5_ref, relu=False)     # fc5 (padded to 128 lanes), f32
    o_ref[...] = y.astype(o_ref.dtype)           # bf16 lane-dense store


def _choose_tile(B, tile_b):
    """Batch tile: 128-row aligned when possible; >=2 balanced grid steps for
    medium/large B (keeps both v7x TensorCores busy); one exact tile for small
    B (block rows == full array rows is always a legal block dim)."""
    tile_b = max(128, min(int(tile_b), 4096))
    if B <= 256:
        return B
    if B <= 2 * tile_b:
        return _round_up(pl.cdiv(B, 2), 128)
    return _round_up(tile_b, 128)


def _prepare_params(params):
    """bf16 weights / f32 biases, with every hidden & output width zero-padded
    to a multiple of 128 lanes.  Padding is free in vregs (64/32-wide values
    already occupy full 128-lane vregs) and keeps every MXU pass full-width;
    zero pads propagate zeros through bias/ReLU, so the math is unchanged."""
    padded = []
    prev_pad = params[0][0].shape[0]             # input dim: left unpadded (168)
    for (w, b) in params:
        din, dout = w.shape
        din_pad = prev_pad
        dout_pad = _round_up(dout, LANE)
        w = jnp.pad(w, ((0, din_pad - din), (0, dout_pad - dout)))
        b = jnp.pad(b, ((0, 0), (0, dout_pad - dout)))
        padded.append((w.astype(jnp.bfloat16), b.astype(jnp.float32)))
        prev_pad = dout_pad
    return padded


def mlp_forward(x, params, tile_b=1024):
    """x: (B, in_dim) f32.  params: list of 5 (w, b), w: (in, out), b: (1, out).
    Returns (B, out_dim) f32 (bf16 matmul precision, f32 accumulation)."""
    B, in_dim = x.shape
    out_dim = params[-1][0].shape[-1]

    pp = _prepare_params(params)
    n_out = pp[-1][0].shape[-1]                  # 128 (padded output lanes)

    tb = _choose_tile(B, tile_b)
    grid = (pl.cdiv(B, tb),)                     # ragged last tile handled by Pallas

    flat = []
    for w, b in pp:
        flat.extend((w, b))

    const2 = lambda i: (0, 0)                    # block-invariant -> VMEM-resident
    in_specs = [pl.BlockSpec((tb, in_dim), lambda i: (i, 0))]
    for w, b in pp:
        in_specs.append(pl.BlockSpec(w.shape, const2))
        in_specs.append(pl.BlockSpec(b.shape, const2))

    flops = 2 * B * sum(int(w.shape[0]) * int(w.shape[1]) for w, _ in pp)
    bytes_accessed = int(B * in_dim * 4 + B * n_out * 2 +
                         sum(w.size * 2 + b.size * 4 for w, b in pp))

    out = pl.pallas_call(
        mlp_kernel,
        out_shape=jax.ShapeDtypeStruct((B, n_out), jnp.bfloat16),
        grid=grid,
        in_specs=in_specs,
        out_specs=pl.BlockSpec((tb, n_out), lambda i: (i, 0)),
        compiler_params=pltpu.CompilerParams(
            dimension_semantics=("parallel",),   # 2-TC sharding on v7x
        ),
        cost_estimate=pl.CostEstimate(
            flops=flops, transcendentals=0, bytes_accessed=bytes_accessed),
    )(x, *flat)

    # Wrapper-side ops touch only the tiny (B, 9) slice.
    return out[:, :out_dim].astype(jnp.float32)


def init_params(key, in_dim=IN_DIM, out_dim=OUT_DIM):
    """Deterministic init mimicking PyTorch nn.Linear default (U[-1/sqrt(fan_in), +])."""
    dims = [in_dim, *HIDDEN, out_dim]
    params = []
    for i in range(len(dims) - 1):
        key, kw, kb = jax.random.split(key, 3)
        bound = 1.0 / (dims[i] ** 0.5)
        w = jax.random.uniform(kw, (dims[i], dims[i + 1]),
                               minval=-bound, maxval=bound, dtype=jnp.float32)
        b = jax.random.uniform(kb, (1, dims[i + 1]),
                               minval=-bound, maxval=bound, dtype=jnp.float32)
        params.append((w, b))
    return params


def mlp_reference_f32(x, params):
    """Pure-f32 reference (matches the PyTorch module math exactly)."""
    h = x
    for i, (w, b) in enumerate(params):
        h = h @ w + b
        if i < len(params) - 1:
            h = jnp.maximum(h, 0.0)
    return h


def mlp_reference_bf16(x, params):
    """Reference emulating the kernel's dtype strategy:
    bf16 operands, f32 accumulation, bf16 inter-layer activations, bf16 output."""
    h = x.astype(jnp.bfloat16)
    for i, (w, b) in enumerate(params):
        y = jnp.dot(h, w.astype(jnp.bfloat16),
                    preferred_element_type=jnp.float32) + b.astype(jnp.float32)
        if i < len(params) - 1:
            h = jnp.maximum(y, 0.0).astype(jnp.bfloat16)
        else:
            h = y.astype(jnp.bfloat16).astype(jnp.float32)
    return h


if __name__ == "__main__":
    key = jax.random.PRNGKey(0)
    key, kx = jax.random.split(key)

    batch = 8
    x = jax.random.normal(kx, (batch, IN_DIM), dtype=jnp.float32)
    params = init_params(key)

    out = jax.block_until_ready(mlp_forward(x, params))

    ref_bf16 = mlp_reference_bf16(x, params)
    ref_f32 = mlp_reference_f32(x, params)

    assert out.shape == (batch, OUT_DIM), out.shape
    assert jnp.allclose(out, ref_bf16, atol=2e-2, rtol=2e-2), \
        "mismatch vs bf16-emulating reference"
    assert jnp.allclose(out, ref_f32, atol=1e-1, rtol=1e-1), \
        "mismatch vs f32 reference (bf16 quantization tolerance)"

    print("KERNEL_OK")
</pallas_src>

<mosaic_0001>
module attributes {stable_mosaic.version = 11 : i64} {
  func.func @mlp_kernel(%arg0: i32, %arg1: memref<8x168xf32, #tpu.memory_space<vmem>>, %arg2: memref<168x256xbf16, #tpu.memory_space<vmem>>, %arg3: memref<1x256xf32, #tpu.memory_space<vmem>>, %arg4: memref<256x128xbf16, #tpu.memory_space<vmem>>, %arg5: memref<1x128xf32, #tpu.memory_space<vmem>>, %arg6: memref<128x128xbf16, #tpu.memory_space<vmem>>, %arg7: memref<1x128xf32, #tpu.memory_space<vmem>>, %arg8: memref<128x128xbf16, #tpu.memory_space<vmem>>, %arg9: memref<1x128xf32, #tpu.memory_space<vmem>>, %arg10: memref<128x128xbf16, #tpu.memory_space<vmem>>, %arg11: memref<1x128xf32, #tpu.memory_space<vmem>>, %arg12: memref<8x128xbf16, #tpu.memory_space<vmem>>) attributes {dimension_semantics = [#tpu.dimension_semantics<parallel>], iteration_bounds = array<i64: 1>, scalar_prefetch = 0 : i64, scratch_operands = 0 : i64, tpu.core_type = #tpu.core_type<tc>, window_params = [{transform_indices = @transform_0, window_bounds = array<i64: 8, 168>}, {pipeline_mode = #tpu.pipeline_mode<synchronous>, transform_indices = @transform_1, window_bounds = array<i64: 168, 256>}, {pipeline_mode = #tpu.pipeline_mode<synchronous>, transform_indices = @transform_2, window_bounds = array<i64: 1, 256>}, {pipeline_mode = #tpu.pipeline_mode<synchronous>, transform_indices = @transform_3, window_bounds = array<i64: 256, 128>}, {pipeline_mode = #tpu.pipeline_mode<synchronous>, transform_indices = @transform_4, window_bounds = array<i64: 1, 128>}, {pipeline_mode = #tpu.pipeline_mode<synchronous>, transform_indices = @transform_5, window_bounds = array<i64: 128, 128>}, {pipeline_mode = #tpu.pipeline_mode<synchronous>, transform_indices = @transform_6, window_bounds = array<i64: 1, 128>}, {pipeline_mode = #tpu.pipeline_mode<synchronous>, transform_indices = @transform_7, window_bounds = array<i64: 128, 128>}, {pipeline_mode = #tpu.pipeline_mode<synchronous>, transform_indices = @transform_8, window_bounds = array<i64: 1, 128>}, {pipeline_mode = #tpu.pipeline_mode<synchronous>, transform_indices = @transform_9, window_bounds = array<i64: 128, 128>}, {pipeline_mode = #tpu.pipeline_mode<synchronous>, transform_indices = @transform_10, window_bounds = array<i64: 1, 128>}, {transform_indices = @transform_11, window_bounds = array<i64: 8, 128>}]} {
    %c0 = arith.constant 0 : index
    %c0_0 = arith.constant 0 : index
    %0 = vector.load %arg1[%c0, %c0_0] : memref<8x168xf32, #tpu.memory_space<vmem>>, vector<8x168xf32>
    %1 = arith.truncf %0 : vector<8x168xf32> to vector<8x168xbf16>
    %c0_1 = arith.constant 0 : index
    %c0_2 = arith.constant 0 : index
    %2 = vector.load %arg2[%c0_1, %c0_2] : memref<168x256xbf16, #tpu.memory_space<vmem>>, vector<168x256xbf16>
    %cst = arith.constant dense<0.000000e+00> : vector<8x256xf32>
    %3 = tpu.matmul %1, %2, %cst {dimension_numbers = #tpu.dot_dimension_numbers<[1], [0], [0], [1], [0, 0, 1, 1], [], []>} : vector<8x168xbf16>, vector<168x256xbf16>, vector<8x256xf32> -> vector<8x256xf32>
    %c0_3 = arith.constant 0 : index
    %c0_4 = arith.constant 0 : index
    %4 = vector.load %arg3[%c0_3, %c0_4] : memref<1x256xf32, #tpu.memory_space<vmem>>, vector<1x256xf32>
    %5 = vector.broadcast %4 : vector<1x256xf32> to vector<8x256xf32>
    %6 = arith.addf %3, %5 : vector<8x256xf32>
    %cst_5 = arith.constant 0.000000e+00 : f32
    %7 = vector.broadcast %cst_5 : f32 to vector<8x256xf32>
    %8 = arith.maximumf %6, %7 : vector<8x256xf32>
    %9 = arith.truncf %8 : vector<8x256xf32> to vector<8x256xbf16>
    %c0_6 = arith.constant 0 : index
    %c0_7 = arith.constant 0 : index
    %10 = vector.load %arg4[%c0_6, %c0_7] : memref<256x128xbf16, #tpu.memory_space<vmem>>, vector<256x128xbf16>
    %cst_8 = arith.constant dense<0.000000e+00> : vector<8x128xf32>
    %11 = tpu.matmul %9, %10, %cst_8 {dimension_numbers = #tpu.dot_dimension_numbers<[1], [0], [0], [1], [0, 0, 1, 1], [], []>} : vector<8x256xbf16>, vector<256x128xbf16>, vector<8x128xf32> -> vector<8x128xf32>
    %c0_9 = arith.constant 0 : index
    %c0_10 = arith.constant 0 : index
    %12 = vector.load %arg5[%c0_9, %c0_10] : memref<1x128xf32, #tpu.memory_space<vmem>>, vector<1x128xf32>
    %13 = vector.broadcast %12 : vector<1x128xf32> to vector<8x128xf32>
    %14 = arith.addf %11, %13 : vector<8x128xf32>
    %cst_11 = arith.constant 0.000000e+00 : f32
    %15 = vector.broadcast %cst_11 : f32 to vector<8x128xf32>
    %16 = arith.maximumf %14, %15 : vector<8x128xf32>
    %17 = arith.truncf %16 : vector<8x128xf32> to vector<8x128xbf16>
    %c0_12 = arith.constant 0 : index
    %c0_13 = arith.constant 0 : index
    %18 = vector.load %arg6[%c0_12, %c0_13] : memref<128x128xbf16, #tpu.memory_space<vmem>>, vector<128x128xbf16>
    %cst_14 = arith.constant dense<0.000000e+00> : vector<8x128xf32>
    %19 = tpu.matmul %17, %18, %cst_14 {dimension_numbers = #tpu.dot_dimension_numbers<[1], [0], [0], [1], [0, 0, 1, 1], [], []>} : vector<8x128xbf16>, vector<128x128xbf16>, vector<8x128xf32> -> vector<8x128xf32>
    %c0_15 = arith.constant 0 : index
    %c0_16 = arith.constant 0 : index
    %20 = vector.load %arg7[%c0_15, %c0_16] : memref<1x128xf32, #tpu.memory_space<vmem>>, vector<1x128xf32>
    %21 = vector.broadcast %20 : vector<1x128xf32> to vector<8x128xf32>
    %22 = arith.addf %19, %21 : vector<8x128xf32>
    %cst_17 = arith.constant 0.000000e+00 : f32
    %23 = vector.broadcast %cst_17 : f32 to vector<8x128xf32>
    %24 = arith.maximumf %22, %23 : vector<8x128xf32>
    %25 = arith.truncf %24 : vector<8x128xf32> to vector<8x128xbf16>
    %c0_18 = arith.constant 0 : index
    %c0_19 = arith.constant 0 : index
    %26 = vector.load %arg8[%c0_18, %c0_19] : memref<128x128xbf16, #tpu.memory_space<vmem>>, vector<128x128xbf16>
    %cst_20 = arith.constant dense<0.000000e+00> : vector<8x128xf32>
    %27 = tpu.matmul %25, %26, %cst_20 {dimension_numbers = #tpu.dot_dimension_numbers<[1], [0], [0], [1], [0, 0, 1, 1], [], []>} : vector<8x128xbf16>, vector<128x128xbf16>, vector<8x128xf32> -> vector<8x128xf32>
    %c0_21 = arith.constant 0 : index
    %c0_22 = arith.constant 0 : index
    %28 = vector.load %arg9[%c0_21, %c0_22] : memref<1x128xf32, #tpu.memory_space<vmem>>, vector<1x128xf32>
    %29 = vector.broadcast %28 : vector<1x128xf32> to vector<8x128xf32>
    %30 = arith.addf %27, %29 : vector<8x128xf32>
    %cst_23 = arith.constant 0.000000e+00 : f32
    %31 = vector.broadcast %cst_23 : f32 to vector<8x128xf32>
    %32 = arith.maximumf %30, %31 : vector<8x128xf32>
    %33 = arith.truncf %32 : vector<8x128xf32> to vector<8x128xbf16>
    %c0_24 = arith.constant 0 : index
    %c0_25 = arith.constant 0 : index
    %34 = vector.load %arg10[%c0_24, %c0_25] : memref<128x128xbf16, #tpu.memory_space<vmem>>, vector<128x128xbf16>
    %cst_26 = arith.constant dense<0.000000e+00> : vector<8x128xf32>
    %35 = tpu.matmul %33, %34, %cst_26 {dimension_numbers = #tpu.dot_dimension_numbers<[1], [0], [0], [1], [0, 0, 1, 1], [], []>} : vector<8x128xbf16>, vector<128x128xbf16>, vector<8x128xf32> -> vector<8x128xf32>
    %c0_27 = arith.constant 0 : index
    %c0_28 = arith.constant 0 : index
    %36 = vector.load %arg11[%c0_27, %c0_28] : memref<1x128xf32, #tpu.memory_space<vmem>>, vector<1x128xf32>
    %37 = vector.broadcast %36 : vector<1x128xf32> to vector<8x128xf32>
    %38 = arith.addf %35, %37 : vector<8x128xf32>
    %39 = arith.truncf %38 : vector<8x128xf32> to vector<8x128xbf16>
    %c0_29 = arith.constant 0 : index
    %c0_30 = arith.constant 0 : index
    %40 = vector.load %arg12[%c0_29, %c0_30] : memref<8x128xbf16, #tpu.memory_space<vmem>>, vector<8x128xbf16>
    tpu.vector_store %arg12[%c0_29, %c0_30], %39 {strides = array<i32>} : memref<8x128xbf16, #tpu.memory_space<vmem>>, vector<8x128xbf16>,
    return
  }
  func.func @transform_0(%arg0: i32) -> (i32, i32) {
    %c0_i32 = arith.constant 0 : i32
    %c0_i32_0 = arith.constant 0 : i32
    return %arg0, %c0_i32 : i32, i32
  }
  func.func @transform_1(%arg0: i32) -> (i32, i32) {
    %c0_i32 = arith.constant 0 : i32
    %c0_i32_0 = arith.constant 0 : i32
    %c0_i32_1 = arith.constant 0 : i32
    return %c0_i32, %c0_i32_0 : i32, i32
  }
  func.func @transform_2(%arg0: i32) -> (i32, i32) {
    %c0_i32 = arith.constant 0 : i32
    %c0_i32_0 = arith.constant 0 : i32
    %c0_i32_1 = arith.constant 0 : i32
    return %c0_i32, %c0_i32_0 : i32, i32
  }
  func.func @transform_3(%arg0: i32) -> (i32, i32) {
    %c0_i32 = arith.constant 0 : i32
    %c0_i32_0 = arith.constant 0 : i32
    %c0_i32_1 = arith.constant 0 : i32
    return %c0_i32, %c0_i32_0 : i32, i32
  }
  func.func @transform_4(%arg0: i32) -> (i32, i32) {
    %c0_i32 = arith.constant 0 : i32
    %c0_i32_0 = arith.constant 0 : i32
    %c0_i32_1 = arith.constant 0 : i32
    return %c0_i32, %c0_i32_0 : i32, i32
  }
  func.func @transform_5(%arg0: i32) -> (i32, i32) {
    %c0_i32 = arith.constant 0 : i32
    %c0_i32_0 = arith.constant 0 : i32
    %c0_i32_1 = arith.constant 0 : i32
    return %c0_i32, %c0_i32_0 : i32, i32
  }
  func.func @transform_6(%arg0: i32) -> (i32, i32) {
    %c0_i32 = arith.constant 0 : i32
    %c0_i32_0 = arith.constant 0 : i32
    %c0_i32_1 = arith.constant 0 : i32
    return %c0_i32, %c0_i32_0 : i32, i32
  }
  func.func @transform_7(%arg0: i32) -> (i32, i32) {
    %c0_i32 = arith.constant 0 : i32
    %c0_i32_0 = arith.constant 0 : i32
    %c0_i32_1 = arith.constant 0 : i32
    return %c0_i32, %c0_i32_0 : i32, i32
  }
  func.func @transform_8(%arg0: i32) -> (i32, i32) {
    %c0_i32 = arith.constant 0 : i32
    %c0_i32_0 = arith.constant 0 : i32
    %c0_i32_1 = arith.constant 0 : i32
    return %c0_i32, %c0_i32_0 : i32, i32
  }
  func.func @transform_9(%arg0: i32) -> (i32, i32) {
    %c0_i32 = arith.constant 0 : i32
    %c0_i32_0 = arith.constant 0 : i32
    %c0_i32_1 = arith.constant 0 : i32
    return %c0_i32, %c0_i32_0 : i32, i32
  }
  func.func @transform_10(%arg0: i32) -> (i32, i32) {
    %c0_i32 = arith.constant 0 : i32
    %c0_i32_0 = arith.constant 0 : i32
    %c0_i32_1 = arith.constant 0 : i32
    return %c0_i32, %c0_i32_0 : i32, i32
  }
  func.func @transform_11(%arg0: i32) -> (i32, i32) {
    %c0_i32 = arith.constant 0 : i32
    %c0_i32_0 = arith.constant 0 : i32
    return %arg0, %c0_i32 : i32, i32
  }
}

</mosaic_0001>

<llo_original>
// kernel: tpu_custom_call.1
$region0: #{tpu_custom_call.1}
  #allocation0 [shape = 'u32[]', space=smem, size = 0x4, offset = 0x4, fixed_abs, tag = 'smem constant byte address 0x4 - core index']
  #allocation1 [shape = 'u32[72,128]{1,0:T(1,128)}', space=vmem, size = 0x9000, scoped, tag = 'internal scratch']
  %s0 = inlined_call_operand.hbm [shape: f32[8,168], index: 0, kind: input, shape index: {}]
  %s1 = inlined_call_operand.hbm [shape: bf16[168,256], index: 1, kind: input, shape index: {}]
  %s2 = inlined_call_operand.hbm [shape: f32[1,256], index: 2, kind: input, shape index: {}]
  %s3 = inlined_call_operand.hbm [shape: bf16[256,128], index: 3, kind: input, shape index: {}]
  %s4 = inlined_call_operand.vmem [shape: f32[1,128], index: 4, kind: input, shape index: {}]
  %s5 = inlined_call_operand.hbm [shape: bf16[128,128], index: 5, kind: input, shape index: {}]
  %s6 = inlined_call_operand.vmem [shape: f32[1,128], index: 6, kind: input, shape index: {}]
  %s7 = inlined_call_operand.hbm [shape: bf16[128,128], index: 7, kind: input, shape index: {}]
  %s8 = inlined_call_operand.vmem [shape: f32[1,128], index: 8, kind: input, shape index: {}]
  %s9 = inlined_call_operand.hbm [shape: bf16[128,128], index: 9, kind: input, shape index: {}]
  %s10 = inlined_call_operand.vmem [shape: f32[1,128], index: 10, kind: input, shape index: {}]
  %s11 = inlined_call_operand.hbm [shape: bf16[8,128], index: 11, kind: output, shape index: {}]
  %s12 = sld [smem:[#allocation0]]
  $region82: #{tpu_custom_call.1} parent=0
    _
  %s14 = ssub.s32 1, %s12
  %s15 = scalar_select 0, %s14, %s12
  $region1: #{tpu_custom_call.1} parent=0
    #allocation2 [shape = 'u8[8192]{0}', space=vmem, size = 0x2000, scoped, tag = 'input window, operand 0, single buffered']
    #allocation3 [shape = 's32[1]{0}', space=sflag, size = 0x4, scoped, tag = 'scoped memory for tpu_custom_call.1']
    #allocation4 [shape = 's32[1]{0}', space=sflag, size = 0x4, scoped, tag = 'scoped memory for tpu_custom_call.1']
    #allocation5 [shape = 'u8[86016]{0}', space=vmem, size = 0x15000, scoped, tag = 'input window, operand 1, single buffered']
    #allocation6 [shape = 's32[1]{0}', space=sflag, size = 0x4, scoped, tag = 'scoped memory for tpu_custom_call.1']
    #allocation7 [shape = 'u8[1024]{0}', space=vmem, size = 0x400, scoped, tag = 'input window, operand 2, single buffered']
    #allocation8 [shape = 'u8[65536]{0}', space=vmem, size = 0x10000, scoped, tag = 'input window, operand 3, single buffered']
    #allocation9 [shape = 's32[1]{0}', space=sflag, size = 0x4, scoped, tag = 'scoped memory for tpu_custom_call.1']
    #allocation10 [shape = 'u8[32768]{0}', space=vmem, size = 0x8000, scoped, tag = 'input window, operand 5, single buffered']
    #allocation11 [shape = 'u8[32768]{0}', space=vmem, size = 0x8000, scoped, tag = 'input window, operand 7, single buffered']
    #allocation12 [shape = 's32[1]{0}', space=sflag, size = 0x4, scoped, tag = 'scoped memory for tpu_custom_call.1']
    #allocation13 [shape = 'u8[32768]{0}', space=vmem, size = 0x8000, scoped, tag = 'input window, operand 9, single buffered']
    #allocation14 [shape = 'u8[2048]{0}', space=vmem, size = 0x800, scoped, tag = 'output window, operand 0, single buffered']
    %16 = vsyncpa [#allocation3], 0
    %17 = vsyncpa [#allocation6], 0
    %18 = vsyncpa [#allocation9], 0
    %19 = vsyncpa [#allocation12], 0
    %20 = vsyncpa [#allocation4], 0
    // Predicated region
    $region2: #{tpu_custom_call.1} parent=1 // pred_check
      _
    $region3: #{tpu_custom_call.1} parent=1 // pred_check_branch
      %22 = sbr.rel (0) target = $region5
    $region4: #{tpu_custom_call.1} parent=1 // pred_region
      %24 = vsyncadd [#allocation3], 0
      %s26 = sshll.u32 %s0, 4
      %s27 = int_to_ptr.hbm [resolvable:$true] %s26
      %s28 = sshll.u32 [#allocation2], 4
      %s29 = int_to_ptr.vmem [resolvable:$true] %s28
      %31 = dma.hbm_to_vmem [thread:$0]  %s27, 256, %s29, [#allocation3]
    $region5: #{tpu_custom_call.1} parent=1 // pred_fallthru
      _
    // Predicated region
    $region6: #{tpu_custom_call.1} parent=1 // pred_check
      _
    $region7: #{tpu_custom_call.1} parent=1 // pred_check_branch
      %33 = sbr.rel (0) target = $region9
    $region8: #{tpu_custom_call.1} parent=1 // pred_region
      %35 = vsyncadd [#allocation6], 0
      %s36 = sshll.u32 %s1, 4
      %s37 = int_to_ptr.hbm [resolvable:$true] %s36
      %s38 = sshll.u32 [#allocation5], 4
      %s39 = int_to_ptr.vmem [resolvable:$true] %s38
      %44 = dma.hbm_to_vmem [thread:$0]  %s37, 2688, %s39, [#allocation6], 128, 128, 8
    $region9: #{tpu_custom_call.1} parent=1 // pred_fallthru
      _
    // Predicated region
    $region10: #{tpu_custom_call.1} parent=1 // pred_check
      _
    $region11: #{tpu_custom_call.1} parent=1 // pred_check_branch
      %46 = sbr.rel (0) target = $region13
    $region12: #{tpu_custom_call.1} parent=1 // pred_region
      %48 = vsyncadd [#allocation6], 0
      %s50 = sshll.u32 %s2, 4
      %s51 = int_to_ptr.hbm [resolvable:$true] %s50
      %s52 = sshll.u32 [#allocation7], 4
      %s53 = int_to_ptr.vmem [resolvable:$true] %s52
      %55 = dma.hbm_to_vmem [thread:$0]  %s51, 32, %s53, [#allocation6]
    $region13: #{tpu_custom_call.1} parent=1 // pred_fallthru
      _
    // Predicated region
    $region14: #{tpu_custom_call.1} parent=1 // pred_check
      _
    $region15: #{tpu_custom_call.1} parent=1 // pred_check_branch
      %57 = sbr.rel (0) target = $region17
    $region16: #{tpu_custom_call.1} parent=1 // pred_region
      %59 = vsyncadd [#allocation9], 0
      %s60 = sshll.u32 %s3, 4
      %s61 = int_to_ptr.hbm [resolvable:$true] %s60
      %s62 = sshll.u32 [#allocation8], 4
      %s63 = int_to_ptr.vmem [resolvable:$true] %s62
      %68 = dma.hbm_to_vmem [thread:$0]  %s61, 2048, %s63, [#allocation9], 64, 64, 4
    $region17: #{tpu_custom_call.1} parent=1 // pred_fallthru
      _
    // Predicated region
    $region18: #{tpu_custom_call.1} parent=1 // pred_check
      _
    $region19: #{tpu_custom_call.1} parent=1 // pred_check_branch
      %70 = sbr.rel (0) target = $region21
    $region20: #{tpu_custom_call.1} parent=1 // pred_region
      _
    $region21: #{tpu_custom_call.1} parent=1 // pred_fallthru
      _
    // Predicated region
    $region22: #{tpu_custom_call.1} parent=1 // pred_check
      _
    $region23: #{tpu_custom_call.1} parent=1 // pred_check_branch
      %72 = sbr.rel (0) target = $region25
    $region24: #{tpu_custom_call.1} parent=1 // pred_region
      %74 = vsyncadd [#allocation9], 0
      %s75 = sshll.u32 %s5, 4
      %s76 = int_to_ptr.hbm [resolvable:$true] %s75
      %s77 = sshll.u32 [#allocation10], 4
      %s78 = int_to_ptr.vmem [resolvable:$true] %s77
      %83 = dma.hbm_to_vmem [thread:$0]  %s76, 1024, %s78, [#allocation9], 64, 64, 4
    $region25: #{tpu_custom_call.1} parent=1 // pred_fallthru
      _
    // Predicated region
    $region26: #{tpu_custom_call.1} parent=1 // pred_check
      _
    $region27: #{tpu_custom_call.1} parent=1 // pred_check_branch
      %85 = sbr.rel (0) target = $region29
    $region28: #{tpu_custom_call.1} parent=1 // pred_region
      _
    $region29: #{tpu_custom_call.1} parent=1 // pred_fallthru
      _
    // Predicated region
    $region30: #{tpu_custom_call.1} parent=1 // pred_check
      _
    $region31: #{tpu_custom_call.1} parent=1 // pred_check_branch
      %87 = sbr.rel (0) target = $region33
    $region32: #{tpu_custom_call.1} parent=1 // pred_region
      %89 = vsyncadd [#allocation12], 0
      %s90 = sshll.u32 %s7, 4
      %s91 = int_to_ptr.hbm [resolvable:$true] %s90
      %s92 = sshll.u32 [#allocation11], 4
      %s93 = int_to_ptr.vmem [resolvable:$true] %s92
      %98 = dma.hbm_to_vmem [thread:$0]  %s91, 1024, %s93, [#allocation12], 64, 64, 4
    $region33: #{tpu_custom_call.1} parent=1 // pred_fallthru
      _
    // Predicated region
    $region34: #{tpu_custom_call.1} parent=1 // pred_check
      _
    $region35: #{tpu_custom_call.1} parent=1 // pred_check_branch
      %100 = sbr.rel (0) target = $region37
    $region36: #{tpu_custom_call.1} parent=1 // pred_region
      _
    $region37: #{tpu_custom_call.1} parent=1 // pred_fallthru
      _
    // Predicated region
    $region38: #{tpu_custom_call.1} parent=1 // pred_check
      _
    $region39: #{tpu_custom_call.1} parent=1 // pred_check_branch
      %102 = sbr.rel (0) target = $region41
    $region40: #{tpu_custom_call.1} parent=1 // pred_region
      %104 = vsyncadd [#allocation12], 0
      %s105 = sshll.u32 %s9, 4
      %s106 = int_to_ptr.hbm [resolvable:$true] %s105
      %s107 = sshll.u32 [#allocation13], 4
      %s108 = int_to_ptr.vmem [resolvable:$true] %s107
      %113 = dma.hbm_to_vmem [thread:$0]  %s106, 1024, %s108, [#allocation12], 64, 64, 4
    $region41: #{tpu_custom_call.1} parent=1 // pred_fallthru
      _
    // Predicated region
    $region42: #{tpu_custom_call.1} parent=1 // pred_check
      _
    $region43: #{tpu_custom_call.1} parent=1 // pred_check_branch
      %115 = sbr.rel (0) target = $region45
    $region44: #{tpu_custom_call.1} parent=1 // pred_region
      _
    $region45: #{tpu_custom_call.1} parent=1 // pred_fallthru
      _
    // Predicated region
    $region46: #{tpu_custom_call.1} parent=1 // pred_check
      _
    $region47: #{tpu_custom_call.1} parent=1 // pred_check_branch
      %117 = sbr.rel (0) target = $region49
    $region48: #{tpu_custom_call.1} parent=1 // pred_region
      %119 = dma.done [#allocation3], 256
    $region49: #{tpu_custom_call.1} parent=1 // pred_fallthru
      _
    // Predicated region
    $region50: #{tpu_custom_call.1} parent=1 // pred_check
      _
    $region51: #{tpu_custom_call.1} parent=1 // pred_check_branch
      %121 = sbr.rel (0) target = $region53
    $region52: #{tpu_custom_call.1} parent=1 // pred_region
      %123 = dma.done [#allocation6], 2688
    $region53: #{tpu_custom_call.1} parent=1 // pred_fallthru
      _
    // Predicated region
    $region54: #{tpu_custom_call.1} parent=1 // pred_check
      _
    $region55: #{tpu_custom_call.1} parent=1 // pred_check_branch
      %125 = sbr.rel (0) target = $region57
    $region56: #{tpu_custom_call.1} parent=1 // pred_region
      %127 = dma.done [#allocation6], 32
    $region57: #{tpu_custom_call.1} parent=1 // pred_fallthru
      _
    // Predicated region
    $region58: #{tpu_custom_call.1} parent=1 // pred_check
      _
    $region59: #{tpu_custom_call.1} parent=1 // pred_check_branch
      %129 = sbr.rel (0) target = $region61
    $region60: #{tpu_custom_call.1} parent=1 // pred_region
      %131 = dma.done [#allocation9], 2048
    $region61: #{tpu_custom_call.1} parent=1 // pred_fallthru
      _
    // Predicated region
    $region62: #{tpu_custom_call.1} parent=1 // pred_check
      _
    $region63: #{tpu_custom_call.1} parent=1 // pred_check_branch
      %133 = sbr.rel (0) target = $region65
    $region64: #{tpu_custom_call.1} parent=1 // pred_region
      %135 = dma.done [#allocation9], 1024
    $region65: #{tpu_custom_call.1} parent=1 // pred_fallthru
      _
    // Predicated region
    $region66: #{tpu_custom_call.1} parent=1 // pred_check
      _
    $region67: #{tpu_custom_call.1} parent=1 // pred_check_branch
      %137 = sbr.rel (0) target = $region69
    $region68: #{tpu_custom_call.1} parent=1 // pred_region
      %139 = dma.done [#allocation12], 1024
    $region69: #{tpu_custom_call.1} parent=1 // pred_fallthru
      _
    // Predicated region
    $region70: #{tpu_custom_call.1} parent=1 // pred_check
      _
    $region71: #{tpu_custom_call.1} parent=1 // pred_check_branch
      %141 = sbr.rel (0) target = $region73
    $region72: #{tpu_custom_call.1} parent=1 // pred_region
      %143 = dma.done [#allocation12], 1024
    $region73: #{tpu_custom_call.1} parent=1 // pred_fallthru
      _
    %v145 = vld [vmem:[#allocation2] sm:$0xff]
    %v146 = vld [vmem:[#allocation2 + $0x8] sm:$0xff]
    %v147 = vpack.c.bf16 %v145, %v145
    %v148 = vpack.c.bf16 %v146, %v146
    %v149 = vld [vmem:[#allocation5] sm:$0xff]
    %v150 = vld [vmem:[#allocation5 + $0x8] sm:$0xff]
    %v151 = vld [vmem:[#allocation5 + $0x10] sm:$0xff]
    %v152 = vld [vmem:[#allocation5 + $0x18] sm:$0xff]
    %v153 = vld [vmem:[#allocation5 + $0x20] sm:$0xff]
    %v154 = vld [vmem:[#allocation5 + $0x28] sm:$0xff]
    %v155 = vld [vmem:[#allocation5 + $0x30] sm:$0xff]
    %v156 = vld [vmem:[#allocation5 + $0x38] sm:$0xff]
    %v157 = vld [vmem:[#allocation5 + $0x40] sm:$0xff]
    %v158 = vld [vmem:[#allocation5 + $0x48] sm:$0xff]
    %v159 = vld [vmem:[#allocation5 + $0x50] sm:$0xff]
    %v160 = vld [vmem:[#allocation5 + $0x58] sm:$0xff]
    %v161 = vld [vmem:[#allocation5 + $0x60] sm:$0xff]
    %v162 = vld [vmem:[#allocation5 + $0x68] sm:$0xff]
    %v163 = vld [vmem:[#allocation5 + $0x70] sm:$0xff]
    %v164 = vld [vmem:[#allocation5 + $0x78] sm:$0xff]
    %v165 = vld [vmem:[#allocation5 + $0x80] sm:$0xff]
    %v166 = vld [vmem:[#allocation5 + $0x88] sm:$0xff]
    %v167 = vld [vmem:[#allocation5 + $0x90] sm:$0xff]
    %v168 = vld [vmem:[#allocation5 + $0x98] sm:$0xff]
    %v169 = vld [vmem:[#allocation5 + $0xa0] sm:$0xff]
    %v170 = vld [vmem:[#allocation7] sm:$0x3]
    %v172 = vperm.slane %v170, 0
    %v173 = vperm.slane %v170, 1
    %v197 = vunpack.c.l.b16 %v149
    %v198 = vunpack.c.h.b16 %v149
    %v199 = vunpack.c.l.b16 %v150
    %v200 = vunpack.c.h.b16 %v150
    %v201 = vunpack.c.l.b16 %v151
    %v202 = vunpack.c.h.b16 %v151
    %v203 = vunpack.c.l.b16 %v152
    %v204 = vunpack.c.h.b16 %v152
    %v205 = vunpack.c.l.b16 %v153
    %v206 = vunpack.c.h.b16 %v153
    %v207 = vunpack.c.l.b16 %v154
    %v208 = vunpack.c.h.b16 %v154
    %v209 = vunpack.c.l.b16 %v155
    %v210 = vunpack.c.h.b16 %v155
    %v211 = vunpack.c.l.b16 %v156
    %v212 = vunpack.c.h.b16 %v156
    %v213 = vunpack.c.l.b16 %v157
    %v214 = vunpack.c.h.b16 %v157
    %v215 = vunpack.c.l.b16 %v158
    %v216 = vunpack.c.h.b16 %v158
    %v217 = vunpack.c.l.b16 %v159
    %v218 = vunpack.c.h.b16 %v159
    %v219 = vunpack.c.l.b16 %v160
    %v220 = vunpack.c.h.b16 %v160
    %v221 = vunpack.c.l.b16 %v161
    %v222 = vunpack.c.h.b16 %v161
    %v223 = vunpack.c.l.b16 %v162
    %v224 = vunpack.c.h.b16 %v162
    %v225 = vunpack.c.l.b16 %v163
    %v226 = vunpack.c.h.b16 %v163
    %v227 = vunpack.c.l.b16 %v164
    %v228 = vunpack.c.h.b16 %v164
    %v229 = vunpack.c.l.b16 %v165
    %v230 = vunpack.c.h.b16 %v165
    %v231 = vunpack.c.l.b16 %v166
    %v232 = vunpack.c.h.b16 %v166
    %v233 = vunpack.c.l.b16 %v167
    %v234 = vunpack.c.h.b16 %v167
    %v235 = vunpack.c.l.b16 %v168
    %v236 = vunpack.c.h.b16 %v168
    %v237 = vunpack.c.l.b16 %v169
    %v238 = vunpack.c.h.b16 %v169
    %v239 = vpack.c.b16 %v199, %v197
    %v240 = vpack.c.b16 %v200, %v198
    %v241 = vpack.c.b16 %v203, %v201
    %v242 = vpack.c.b16 %v204, %v202
    %v243 = vpack.c.b16 %v207, %v205
    %v244 = vpack.c.b16 %v208, %v206
    %v245 = vpack.c.b16 %v211, %v209
    %v246 = vpack.c.b16 %v212, %v210
    %v247 = vpack.c.b16 %v215, %v213
    %v248 = vpack.c.b16 %v216, %v214
    %v249 = vpack.c.b16 %v219, %v217
    %v250 = vpack.c.b16 %v220, %v218
    %v251 = vpack.c.b16 %v223, %v221
    %v252 = vpack.c.b16 %v224, %v222
    %v253 = vpack.c.b16 %v227, %v225
    %v254 = vpack.c.b16 %v228, %v226
    %v255 = vpack.c.b16 %v231, %v229
    %v256 = vpack.c.b16 %v232, %v230
    %v257 = vpack.c.b16 %v235, %v233
    %v258 = vpack.c.b16 %v236, %v234
    %v259 = vpack.c.b16 %v237, %v237
    %v260 = vpack.c.b16 %v238, %v238
    %vm281 = vcmask 326656
    %v283 = vsel %vm281, %v148, 0
    %vm285 = vcmask 1043456
    %v287 = vsel %vm285, %v259, 0
    %v290 = vsel %vm285, %v260, 0
    %292 = vmatpush.bf16.msra.mxu0 %v253
    %293 = vmatpush.bf16.msra.mxu0 %v251
    %294 = vmatpush.bf16.msra.mxu0 %v249
    %295 = vmatpush.bf16.msra.mxu0 %v247
    %296 = vmatpush.bf16.msra.mxu0 %v245
    %297 = vmatpush.bf16.msra.mxu0 %v243
    %298 = vmatpush.bf16.msra.mxu0 %v241
    %299 = vmatpush.bf16.msra.mxu0 %v239
    %300 = vmatmul.bf16.gmra.mxu0 %v147
    %v301 = vpop.f32.mrf.mxu0
    %v302 = vadd.f32 %v172, %v301
    %v303 = vpop.f32.mrf.mxu0
    %304 = vdwg.mxu0
    %305 = vmatpush.bf16.msra.mxu0 0
    %306 = vmatpush.bf16.msra.mxu0 0
    %307 = vmatpush.bf16.msra.mxu0 0
    %308 = vmatpush.bf16.msra.mxu0 0
    %309 = vmatpush.bf16.msra.mxu0 0
    %310 = vmatpush.bf16.msra.mxu0 %v287
    %311 = vmatpush.bf16.msra.mxu0 %v257
    %312 = vmatpush.bf16.msra.mxu0 %v255
    %313 = vmatmul.bf16.gmra.mxu0 %v283
    %v314 = vpop.f32.mrf.mxu0
    %v315 = vadd.f32 %v302, %v314
    %v316 = vpop.f32.mrf.mxu0
    %317 = vdwg.mxu0
    %318 = vmatpush.bf16.msra.mxu0 %v254
    %319 = vmatpush.bf16.msra.mxu0 %v252
    %320 = vmatpush.bf16.msra.mxu0 %v250
    %321 = vmatpush.bf16.msra.mxu0 %v248
    %322 = vmatpush.bf16.msra.mxu0 %v246
    %323 = vmatpush.bf16.msra.mxu0 %v244
    %324 = vmatpush.bf16.msra.mxu0 %v242
    %325 = vmatpush.bf16.msra.mxu0 %v240
    %326 = vmatmul.bf16.gmra.mxu0 %v147
    %v327 = vpop.f32.mrf.mxu0
    %v328 = vadd.f32 %v173, %v327
    %v329 = vpop.f32.mrf.mxu0
    %330 = vdwg.mxu0
    %331 = vmatpush.bf16.msra.mxu0 0
    %332 = vmatpush.bf16.msra.mxu0 0
    %333 = vmatpush.bf16.msra.mxu0 0
    %334 = vmatpush.bf16.msra.mxu0 0
    %335 = vmatpush.bf16.msra.mxu0 0
    %336 = vmatpush.bf16.msra.mxu0 %v290
    %337 = vmatpush.bf16.msra.mxu0 %v258
    %338 = vmatpush.bf16.msra.mxu0 %v256
    %339 = vmatmul.bf16.gmra.mxu0 %v283
    %v340 = vpop.f32.mrf.mxu0
    %v341 = vadd.f32 %v328, %v340
    %v342 = vpop.f32.mrf.mxu0
    %343 = vdwg.mxu0
    %v344 = vmax.f32 %v315, 0.0
    %v345 = vmax.f32 %v341, 0.0
    %v346 = vpack.c.bf16 %v344, %v344
    %v347 = vpack.c.bf16 %v345, %v345
    %v348 = vld [vmem:[#allocation8] sm:$0xf]
    %v349 = vld [vmem:[#allocation8 + $0x4] sm:$0xf]
    %v350 = vld [vmem:[#allocation8 + $0x8] sm:$0xf]
    %v351 = vld [vmem:[#allocation8 + $0xc] sm:$0xf]
    %v352 = vld [vmem:[#allocation8 + $0x10] sm:$0xf]
    %v353 = vld [vmem:[#allocation8 + $0x14] sm:$0xf]
    %v354 = vld [vmem:[#allocation8 + $0x18] sm:$0xf]
    %v355 = vld [vmem:[#allocation8 + $0x1c] sm:$0xf]
    %v356 = vld [vmem:[#allocation8 + $0x20] sm:$0xf]
    %v357 = vld [vmem:[#allocation8 + $0x24] sm:$0xf]
    %v358 = vld [vmem:[#allocation8 + $0x28] sm:$0xf]
    %v359 = vld [vmem:[#allocation8 + $0x2c] sm:$0xf]
    %v360 = vld [vmem:[#allocation8 + $0x30] sm:$0xf]
    %v361 = vld [vmem:[#allocation8 + $0x34] sm:$0xf]
    %v362 = vld [vmem:[#allocation8 + $0x38] sm:$0xf]
    %v363 = vld [vmem:[#allocation8 + $0x3c] sm:$0xf]
    %v364 = vld [vmem:[#allocation8 + $0x40] sm:$0xf]
    %v365 = vld [vmem:[#allocation8 + $0x44] sm:$0xf]
    %v366 = vld [vmem:[#allocation8 + $0x48] sm:$0xf]
    %v367 = vld [vmem:[#allocation8 + $0x4c] sm:$0xf]
    %v368 = vld [vmem:[#allocation8 + $0x50] sm:$0xf]
    %v369 = vld [vmem:[#allocation8 + $0x54] sm:$0xf]
    %v370 = vld [vmem:[#allocation8 + $0x58] sm:$0xf]
    %v371 = vld [vmem:[#allocation8 + $0x5c] sm:$0xf]
    %v372 = vld [vmem:[#allocation8 + $0x60] sm:$0xf]
    %v373 = vld [vmem:[#allocation8 + $0x64] sm:$0xf]
    %v374 = vld [vmem:[#allocation8 + $0x68] sm:$0xf]
    %v375 = vld [vmem:[#allocation8 + $0x6c] sm:$0xf]
    %v376 = vld [vmem:[#allocation8 + $0x70] sm:$0xf]
    %v377 = vld [vmem:[#allocation8 + $0x74] sm:$0xf]
    %v378 = vld [vmem:[#allocation8 + $0x78] sm:$0xf]
    %v379 = vld [vmem:[#allocation8 + $0x7c] sm:$0xf]
    %v380 = vld [vmem:[%s4] sm:$0x1]
    %v382 = vperm.slane %v380, 0
    %v416 = vunpack.c.l.b16 %v348
    %v417 = vunpack.c.l.b16 %v349
    %v418 = vunpack.c.l.b16 %v350
    %v419 = vunpack.c.l.b16 %v351
    %v420 = vunpack.c.l.b16 %v352
    %v421 = vunpack.c.l.b16 %v353
    %v422 = vunpack.c.l.b16 %v354
    %v423 = vunpack.c.l.b16 %v355
    %v424 = vunpack.c.l.b16 %v356
    %v425 = vunpack.c.l.b16 %v357
    %v426 = vunpack.c.l.b16 %v358
    %v427 = vunpack.c.l.b16 %v359
    %v428 = vunpack.c.l.b16 %v360
    %v429 = vunpack.c.l.b16 %v361
    %v430 = vunpack.c.l.b16 %v362
    %v431 = vunpack.c.l.b16 %v363
    %v432 = vunpack.c.l.b16 %v364
    %v433 = vunpack.c.l.b16 %v365
    %v434 = vunpack.c.l.b16 %v366
    %v435 = vunpack.c.l.b16 %v367
    %v436 = vunpack.c.l.b16 %v368
    %v437 = vunpack.c.l.b16 %v369
    %v438 = vunpack.c.l.b16 %v370
    %v439 = vunpack.c.l.b16 %v371
    %v440 = vunpack.c.l.b16 %v372
    %v441 = vunpack.c.l.b16 %v373
    %v442 = vunpack.c.l.b16 %v374
    %v443 = vunpack.c.l.b16 %v375
    %v444 = vunpack.c.l.b16 %v376
    %v445 = vunpack.c.l.b16 %v377
    %v446 = vunpack.c.l.b16 %v378
    %v447 = vunpack.c.l.b16 %v379
    %v448 = vpack.c.b16 %v417, %v416
    %v449 = vpack.c.b16 %v419, %v418
    %v450 = vpack.c.b16 %v421, %v420
    %v451 = vpack.c.b16 %v423, %v422
    %v452 = vpack.c.b16 %v425, %v424
    %v453 = vpack.c.b16 %v427, %v426
    %v454 = vpack.c.b16 %v429, %v428
    %v455 = vpack.c.b16 %v431, %v430
    %v456 = vpack.c.b16 %v433, %v432
    %v457 = vpack.c.b16 %v435, %v434
    %v458 = vpack.c.b16 %v437, %v436
    %v459 = vpack.c.b16 %v439, %v438
    %v460 = vpack.c.b16 %v441, %v440
    %v461 = vpack.c.b16 %v443, %v442
    %v462 = vpack.c.b16 %v445, %v444
    %v463 = vpack.c.b16 %v447, %v446
    %480 = vmatpush.bf16.msra.mxu0 %v455
    %481 = vmatpush.bf16.msra.mxu0 %v454
    %482 = vmatpush.bf16.msra.mxu0 %v453
    %483 = vmatpush.bf16.msra.mxu0 %v452
    %484 = vmatpush.bf16.msra.mxu0 %v451
    %485 = vmatpush.bf16.msra.mxu0 %v450
    %486 = vmatpush.bf16.msra.mxu0 %v449
    %487 = vmatpush.bf16.msra.mxu0 %v448
    %488 = vmatmul.bf16.gmra.mxu0 %v346
    %v489 = vpop.f32.mrf.mxu0
    %v490 = vadd.f32 %v382, %v489
    %v491 = vpop.f32.mrf.mxu0
    %492 = vdwg.mxu0
    %493 = vmatpush.bf16.msra.mxu0 %v463
    %494 = vmatpush.bf16.msra.mxu0 %v462
    %495 = vmatpush.bf16.msra.mxu0 %v461
    %496 = vmatpush.bf16.msra.mxu0 %v460
    %497 = vmatpush.bf16.msra.mxu0 %v459
    %498 = vmatpush.bf16.msra.mxu0 %v458
    %499 = vmatpush.bf16.msra.mxu0 %v457
    %500 = vmatpush.bf16.msra.mxu0 %v456
    %501 = vmatmul.bf16.gmra.mxu0 %v347
    %v502 = vpop.f32.mrf.mxu0
    %v503 = vadd.f32 %v490, %v502
    %v504 = vpop.f32.mrf.mxu0
    %505 = vdwg.mxu0
    %v506 = vmax.f32 %v503, 0.0
    %v507 = vpack.c.bf16 %v506, %v506
    %v508 = vld [vmem:[#allocation10] sm:$0xf]
    %v509 = vld [vmem:[#allocation10 + $0x4] sm:$0xf]
    %v510 = vld [vmem:[#allocation10 + $0x8] sm:$0xf]
    %v511 = vld [vmem:[#allocation10 + $0xc] sm:$0xf]
    %v512 = vld [vmem:[#allocation10 + $0x10] sm:$0xf]
    %v513 = vld [vmem:[#allocation10 + $0x14] sm:$0xf]
    %v514 = vld [vmem:[#allocation10 + $0x18] sm:$0xf]
    %v515 = vld [vmem:[#allocation10 + $0x1c] sm:$0xf]
    %v516 = vld [vmem:[#allocation10 + $0x20] sm:$0xf]
    %v517 = vld [vmem:[#allocation10 + $0x24] sm:$0xf]
    %v518 = vld [vmem:[#allocation10 + $0x28] sm:$0xf]
    %v519 = vld [vmem:[#allocation10 + $0x2c] sm:$0xf]
    %v520 = vld [vmem:[#allocation10 + $0x30] sm:$0xf]
    %v521 = vld [vmem:[#allocation10 + $0x34] sm:$0xf]
    %v522 = vld [vmem:[#allocation10 + $0x38] sm:$0xf]
    %v523 = vld [vmem:[#allocation10 + $0x3c] sm:$0xf]
    %v524 = vld [vmem:[%s6] sm:$0x1]
    %v526 = vperm.slane %v524, 0
    %v544 = vunpack.c.l.b16 %v508
    %v545 = vunpack.c.l.b16 %v509
    %v546 = vunpack.c.l.b16 %v510
    %v547 = vunpack.c.l.b16 %v511
    %v548 = vunpack.c.l.b16 %v512
    %v549 = vunpack.c.l.b16 %v513
    %v550 = vunpack.c.l.b16 %v514
    %v551 = vunpack.c.l.b16 %v515
    %v552 = vunpack.c.l.b16 %v516
    %v553 = vunpack.c.l.b16 %v517
    %v554 = vunpack.c.l.b16 %v518
    %v555 = vunpack.c.l.b16 %v519
    %v556 = vunpack.c.l.b16 %v520
    %v557 = vunpack.c.l.b16 %v521
    %v558 = vunpack.c.l.b16 %v522
    %v559 = vunpack.c.l.b16 %v523
    %v560 = vpack.c.b16 %v545, %v544
    %v561 = vpack.c.b16 %v547, %v546
    %v562 = vpack.c.b16 %v549, %v548
    %v563 = vpack.c.b16 %v551, %v550
    %v564 = vpack.c.b16 %v553, %v552
    %v565 = vpack.c.b16 %v555, %v554
    %v566 = vpack.c.b16 %v557, %v556
    %v567 = vpack.c.b16 %v559, %v558
    %576 = vmatpush.bf16.msra.mxu0 %v567
    %577 = vmatpush.bf16.msra.mxu0 %v566
    %578 = vmatpush.bf16.msra.mxu0 %v565
    %579 = vmatpush.bf16.msra.mxu0 %v564
    %580 = vmatpush.bf16.msra.mxu0 %v563
    %581 = vmatpush.bf16.msra.mxu0 %v562
    %582 = vmatpush.bf16.msra.mxu0 %v561
    %583 = vmatpush.bf16.msra.mxu0 %v560
    %584 = vmatmul.bf16.gmra.mxu0 %v507
    %v585 = vpop.f32.mrf.mxu0
    %v586 = vadd.f32 %v526, %v585
    %v587 = vpop.f32.mrf.mxu0
    %588 = vdwg.mxu0
    %v589 = vmax.f32 %v586, 0.0
    %v590 = vpack.c.bf16 %v589, %v589
    %v591 = vld [vmem:[#allocation11] sm:$0xf]
    %v592 = vld [vmem:[#allocation11 + $0x4] sm:$0xf]
    %v593 = vld [vmem:[#allocation11 + $0x8] sm:$0xf]
    %v594 = vld [vmem:[#allocation11 + $0xc] sm:$0xf]
    %v595 = vld [vmem:[#allocation11 + $0x10] sm:$0xf]
    %v596 = vld [vmem:[#allocation11 + $0x14] sm:$0xf]
    %v597 = vld [vmem:[#allocation11 + $0x18] sm:$0xf]
    %v598 = vld [vmem:[#allocation11 + $0x1c] sm:$0xf]
    %v599 = vld [vmem:[#allocation11 + $0x20] sm:$0xf]
    %v600 = vld [vmem:[#allocation11 + $0x24] sm:$0xf]
    %v601 = vld [vmem:[#allocation11 + $0x28] sm:$0xf]
    %v602 = vld [vmem:[#allocation11 + $0x2c] sm:$0xf]
    %v603 = vld [vmem:[#allocation11 + $0x30] sm:$0xf]
    %v604 = vld [vmem:[#allocation11 + $0x34] sm:$0xf]
    %v605 = vld [vmem:[#allocation11 + $0x38] sm:$0xf]
    %v606 = vld [vmem:[#allocation11 + $0x3c] sm:$0xf]
    %v607 = vld [vmem:[%s8] sm:$0x1]
    %v609 = vperm.slane %v607, 0
    %v627 = vunpack.c.l.b16 %v591
    %v628 = vunpack.c.l.b16 %v592
    %v629 = vunpack.c.l.b16 %v593
    %v630 = vunpack.c.l.b16 %v594
    %v631 = vunpack.c.l.b16 %v595
    %v632 = vunpack.c.l.b16 %v596
    %v633 = vunpack.c.l.b16 %v597
    %v634 = vunpack.c.l.b16 %v598
    %v635 = vunpack.c.l.b16 %v599
    %v636 = vunpack.c.l.b16 %v600
    %v637 = vunpack.c.l.b16 %v601
    %v638 = vunpack.c.l.b16 %v602
    %v639 = vunpack.c.l.b16 %v603
    %v640 = vunpack.c.l.b16 %v604
    %v641 = vunpack.c.l.b16 %v605
    %v642 = vunpack.c.l.b16 %v606
    %v643 = vpack.c.b16 %v628, %v627
    %v644 = vpack.c.b16 %v630, %v629
    %v645 = vpack.c.b16 %v632, %v631
    %v646 = vpack.c.b16 %v634, %v633
    %v647 = vpack.c.b16 %v636, %v635
    %v648 = vpack.c.b16 %v638, %v637
    %v649 = vpack.c.b16 %v640, %v639
    %v650 = vpack.c.b16 %v642, %v641
    %659 = vmatpush.bf16.msra.mxu0 %v650
    %660 = vmatpush.bf16.msra.mxu0 %v649
    %661 = vmatpush.bf16.msra.mxu0 %v648
    %662 = vmatpush.bf16.msra.mxu0 %v647
    %663 = vmatpush.bf16.msra.mxu0 %v646
    %664 = vmatpush.bf16.msra.mxu0 %v645
    %665 = vmatpush.bf16.msra.mxu0 %v644
    %666 = vmatpush.bf16.msra.mxu0 %v643
    %667 = vmatmul.bf16.gmra.mxu0 %v590
    %v668 = vpop.f32.mrf.mxu0
    %v669 = vadd.f32 %v609, %v668
    %v670 = vpop.f32.mrf.mxu0
    %671 = vdwg.mxu0
    %v672 = vmax.f32 %v669, 0.0
    %v673 = vpack.c.bf16 %v672, %v672
    %v674 = vld [vmem:[#allocation13] sm:$0xf]
    %v675 = vld [vmem:[#allocation13 + $0x4] sm:$0xf]
    %v676 = vld [vmem:[#allocation13 + $0x8] sm:$0xf]
    %v677 = vld [vmem:[#allocation13 + $0xc] sm:$0xf]
    %v678 = vld [vmem:[#allocation13 + $0x10] sm:$0xf]
    %v679 = vld [vmem:[#allocation13 + $0x14] sm:$0xf]
    %v680 = vld [vmem:[#allocation13 + $0x18] sm:$0xf]
    %v681 = vld [vmem:[#allocation13 + $0x1c] sm:$0xf]
    %v682 = vld [vmem:[#allocation13 + $0x20] sm:$0xf]
    %v683 = vld [vmem:[#allocation13 + $0x24] sm:$0xf]
    %v684 = vld [vmem:[#allocation13 + $0x28] sm:$0xf]
    %v685 = vld [vmem:[#allocation13 + $0x2c] sm:$0xf]
    %v686 = vld [vmem:[#allocation13 + $0x30] sm:$0xf]
    %v687 = vld [vmem:[#allocation13 + $0x34] sm:$0xf]
    %v688 = vld [vmem:[#allocation13 + $0x38] sm:$0xf]
    %v689 = vld [vmem:[#allocation13 + $0x3c] sm:$0xf]
    %v690 = vld [vmem:[%s10] sm:$0x1]
    %v692 = vperm.slane %v690, 0
    %v710 = vunpack.c.l.b16 %v674
    %v711 = vunpack.c.l.b16 %v675
    %v712 = vunpack.c.l.b16 %v676
    %v713 = vunpack.c.l.b16 %v677
    %v714 = vunpack.c.l.b16 %v678
    %v715 = vunpack.c.l.b16 %v679
    %v716 = vunpack.c.l.b16 %v680
    %v717 = vunpack.c.l.b16 %v681
    %v718 = vunpack.c.l.b16 %v682
    %v719 = vunpack.c.l.b16 %v683
    %v720 = vunpack.c.l.b16 %v684
    %v721 = vunpack.c.l.b16 %v685
    %v722 = vunpack.c.l.b16 %v686
    %v723 = vunpack.c.l.b16 %v687
    %v724 = vunpack.c.l.b16 %v688
    %v725 = vunpack.c.l.b16 %v689
    %v726 = vpack.c.b16 %v711, %v710
    %v727 = vpack.c.b16 %v713, %v712
    %v728 = vpack.c.b16 %v715, %v714
    %v729 = vpack.c.b16 %v717, %v716
    %v730 = vpack.c.b16 %v719, %v718
    %v731 = vpack.c.b16 %v721, %v720
    %v732 = vpack.c.b16 %v723, %v722
    %v733 = vpack.c.b16 %v725, %v724
    %742 = vmatpush.bf16.msra.mxu0 %v733
    %743 = vmatpush.bf16.msra.mxu0 %v732
    %744 = vmatpush.bf16.msra.mxu0 %v731
    %745 = vmatpush.bf16.msra.mxu0 %v730
    %746 = vmatpush.bf16.msra.mxu0 %v729
    %747 = vmatpush.bf16.msra.mxu0 %v728
    %748 = vmatpush.bf16.msra.mxu0 %v727
    %749 = vmatpush.bf16.msra.mxu0 %v726
    %750 = vmatmul.bf16.gmra.mxu0 %v673
    %v751 = vpop.f32.mrf.mxu0
    %v752 = vadd.f32 %v692, %v751
    %v753 = vpop.f32.mrf.mxu0
    %754 = vdwg.mxu0
    %v755 = vpack.c.bf16 %v752, %v752
    %756 = vst [vmem:[#allocation14] sm:$0xf] %v755
    // Predicated region
    $region74: #{tpu_custom_call.1} parent=1 // pred_check
      _
    $region75: #{tpu_custom_call.1} parent=1 // pred_check_branch
      %758 = sbr.rel (0) target = $region77
    $region76: #{tpu_custom_call.1} parent=1 // pred_region
      %760 = vsyncadd [#allocation4], 0
      %s762 = sshll.u32 [#allocation14], 4
      %s763 = int_to_ptr.vmem [resolvable:$true] %s762
      %s764 = sshll.u32 %s11, 4
      %s765 = int_to_ptr.hbm [resolvable:$true] %s764
      %767 = dma.vmem_to_hbm [thread:$0]  %s763, 64, %s765, [#allocation4]
    $region77: #{tpu_custom_call.1} parent=1 // pred_fallthru
      _
    // Predicated region
    $region78: #{tpu_custom_call.1} parent=1 // pred_check
      _
    $region79: #{tpu_custom_call.1} parent=1 // pred_check_branch
      %769 = sbr.rel (0) target = $region81
    $region80: #{tpu_custom_call.1} parent=1 // pred_region
      %771 = dma.done [#allocation4], 64
    $region81: #{tpu_custom_call.1} parent=1 // pred_fallthru
      _
    %772 = vsyncpa [#allocation3], 1
    %773 = vsyncpa [#allocation6], 1
    %774 = vsyncpa [#allocation9], 1
    %775 = vsyncpa [#allocation12], 1
    %776 = vsyncpa [#allocation4], 1

</llo_original>
